<compile_context>
chip_gen: v7x
topology: tpu7x:2x2x1
jax: 0.10.0
libtpu: 0.0.40
codegen_flags: <defaults>
</compile_context>

<pallas_src>
import functools

import jax
import jax.numpy as jnp
import numpy as np
from jax.experimental import pallas as pl
from jax.experimental.pallas import tpu as pltpu


def _focal_kernel(x_ref, t_ref, a_ref, o_ref, *, gamma, lane_axis, hw, tm, ragged):
    """x_ref: (C, tm) native-dtype logits; t_ref: (1, tm) small-int targets;
    a_ref: (C, 1) f32 alpha; o_ref: (1, tm) f32 per-lane loss accumulator
    (resident across the inner 'arbitrary' grid axis)."""
    inner = pl.program_id(1)

    @pl.when(inner == 0)
    def _():
        o_ref[...] = jnp.zeros_like(o_ref)

    x = x_ref[...].astype(jnp.float32)      # (C, tm): upcast after the (cheap) load
    t = t_ref[...].astype(jnp.int32)        # (1, tm)
    alpha = a_ref[...]                      # (C, 1)  f32 per-class alpha

    if ragged:
        # Ragged last lane tile: lanes past HW hold undefined data. Sanitize the
        # logits (keeps exp/max finite) and zero the loss for those lanes below.
        j = pl.program_id(lane_axis)
        lane = jax.lax.broadcasted_iota(jnp.int32, (1, tm), 1)
        valid = (j * tm + lane) < hw        # (1, tm) bool
        x = jnp.where(valid, x, 0.0)

    # log_softmax pieces over the class (sublane) axis.
    m = jnp.max(x, axis=0, keepdims=True)                        # (1, tm)
    z = x - m                                                    # (C, tm)
    lse = jnp.log(jnp.sum(jnp.exp(z), axis=0, keepdims=True))    # (1, tm)

    # Scatter-free one-hot gather of the target class.
    cls = jax.lax.broadcasted_iota(jnp.int32, z.shape, 0)        # (C, tm)
    mask = (cls == t).astype(jnp.float32)                        # (C, tm)

    z_t = jnp.sum(z * mask, axis=0, keepdims=True)               # (1, tm)
    alpha_t = jnp.sum(alpha * mask, axis=0, keepdims=True)       # (1, tm)

    logpt = z_t - lse                                            # (1, tm)
    pt = jnp.exp(logpt)
    u = jnp.maximum(1.0 - pt, 0.0)                               # clamp rounding negatives

    gi = int(round(float(gamma)))
    if abs(float(gamma) - gi) < 1e-12 and 0 <= gi <= 16:
        # Integer-gamma fast path: minimal VPU multiply chain (gamma=2 -> u*u).
        if gi == 0:
            w = jnp.ones_like(u)
        else:
            w = u
            for _ in range(gi - 1):
                w = w * u
    else:
        # Non-integer gamma: guard against log(0) inside power's exp/log lowering.
        w = jnp.where(u > 0.0, jnp.power(jnp.maximum(u, 1e-30), gamma), 0.0)

    loss = (-alpha_t) * w * logpt                                # (1, tm)
    if ragged:
        loss = loss * valid.astype(jnp.float32)                  # zero the OOB tail lanes
    o_ref[...] = o_ref[...] + loss


def _vmem_params():
    """(vmem_limit_bytes, tile_budget_bytes, tm_cap) per TPU generation."""
    phys = 64 << 20
    try:
        info = pltpu.get_tpu_info()
        phys = int(getattr(info, "vmem_capacity_bytes", phys))
    except Exception:
        pass
    if phys >= (128 << 20):
        # v5e / v6e: 128 MiB physical VMEM -> big tiles to amortize per-step overhead.
        return 64 << 20, 40 << 20, 65536
    # v7x (64 MiB physical) or unknown: stay conservative.
    return 32 << 20, 14 << 20, 32768


def _pick_tm(C, HW, in_itemsize, tile_budget_bytes, tm_cap):
    """Lane-tile width: as large as the VMEM budget allows, counting double-buffered
    I/O tiles AND the f32 (C, tm) kernel temporaries; multiple of 128."""
    sub = max(8, 32 // max(1, in_itemsize))          # sublane padding of the logits dtype
    c_io = pl.cdiv(C, sub) * sub
    c_f32 = pl.cdiv(C, 8) * 8
    per_lane = (2 * c_io * in_itemsize               # double-buffered logits tile
                + 64                                 # double-buffered sublane-padded targets
                + 64                                 # f32 per-lane output accumulator
                + 6 * c_f32 * 4)                     # f32 (C, tm) temporaries (z, exp, mask, ...)
    tm = tile_budget_bytes // per_lane
    tm = min(tm, tm_cap)
    tm = min(tm, pl.cdiv(HW, 128) * 128)
    tm = max(128, (tm // 128) * 128)
    return int(tm)


def focal_loss(inputs, targets, alpha=None, gamma=2.0, size_average=True, tm=None):
    """inputs: (N, C, H, W) float logits (any float dtype); targets: (N, H, W) int class ids."""
    N, C, H, W = inputs.shape
    HW = H * W
    M = N * HW

    if alpha is None:
        alpha = jnp.ones((C, 1), jnp.float32)
    alpha = jnp.asarray(alpha, jnp.float32).reshape(C, 1)

    # Free, contiguous reshape -- keep the native logits dtype (no f32 upcast pass in HBM).
    x = inputs.reshape(N, C, HW)

    # Shrink the targets stream (int8 for C<128) -- upcast to int32 inside the kernel.
    if C <= 127:
        tgt_dtype = jnp.int8
    elif C <= 32767:
        tgt_dtype = jnp.int16
    else:
        tgt_dtype = jnp.int32
    t = targets.astype(tgt_dtype).reshape(N, 1, HW)

    vmem_limit, tile_budget, tm_cap = _vmem_params()
    if tm is None:
        tm = _pick_tm(C, HW, jnp.dtype(x.dtype).itemsize, tile_budget, tm_cap)

    J = pl.cdiv(HW, tm)                 # number of lane tiles (no jnp.pad copy)
    ragged = (J * tm != HW)

    # Put the higher-trip-count axis first as the "parallel" axis (megacore on v7x);
    # the other axis is the trailing "arbitrary" reduction over which the per-lane
    # accumulator output block stays resident.
    if J >= N:
        grid = (J, N)
        lane_axis = 0
        x_map = lambda p, a: (a, 0, p)
        t_map = lambda p, a: (a, 0, p)
        out_rows = J
    else:
        grid = (N, J)
        lane_axis = 1
        x_map = lambda p, a: (p, 0, a)
        t_map = lambda p, a: (p, 0, a)
        out_rows = N

    kernel = functools.partial(_focal_kernel, gamma=float(gamma),
                               lane_axis=lane_axis, hw=HW, tm=tm, ragged=ragged)

    partials = pl.pallas_call(
        kernel,
        out_shape=jax.ShapeDtypeStruct((out_rows, 1, tm), jnp.float32),
        grid_spec=pltpu.PrefetchScalarGridSpec(
            num_scalar_prefetch=0,
            grid=grid,
            in_specs=[
                pl.BlockSpec((pl.Squeezed(), C, tm), x_map),           # logits (native dtype)
                pl.BlockSpec((pl.Squeezed(), 1, tm), t_map),           # targets (int8/16)
                pl.BlockSpec((C, 1), lambda p, a: (0, 0)),             # alpha (resident)
            ],
            out_specs=pl.BlockSpec((pl.Squeezed(), 1, tm), lambda p, a: (p, 0, 0)),
        ),
        compiler_params=pltpu.CompilerParams(
            dimension_semantics=("parallel", "arbitrary"),
            vmem_limit_bytes=vmem_limit,
        ),
    )(x, t, alpha)

    total = jnp.sum(partials)           # single cheap reduce outside the kernel
    if size_average:
        return total / jnp.float32(M)
    return total


def _focal_loss_ref(inputs, targets, alpha, gamma, size_average):
    N, C, H, W = inputs.shape
    logp = jax.nn.log_softmax(inputs.astype(jnp.float32), axis=1)   # (N,C,H,W)
    logp = jnp.transpose(logp, (0, 2, 3, 1)).reshape(-1, C)         # (M,C)
    ids = targets.reshape(-1)
    logpt = jnp.take_along_axis(logp, ids[:, None], axis=1)[:, 0]
    alpha_t = alpha.reshape(-1)[ids]
    loss = -alpha_t * jnp.power(1.0 - jnp.exp(logpt), gamma) * logpt
    return jnp.mean(loss) if size_average else jnp.sum(loss)


if __name__ == "__main__":
    key = jax.random.PRNGKey(0)
    ks = jax.random.split(key, 6)

    C = 5
    alpha = jnp.ones((C, 1), jnp.float32)   # matches torch.ones(C, 1)

    # Case 1: module defaults (class_num=5), bf16 logits (native-dtype path),
    # HW a multiple of 128 -> non-ragged path, batch axis parallel.
    N, H, W = 2, 16, 16
    x = jax.random.normal(ks[0], (N, C, H, W), dtype=jnp.float32).astype(jnp.bfloat16)
    t = jax.random.randint(ks[1], (N, H, W), 0, C, dtype=jnp.int32)
    out = jax.block_until_ready(focal_loss(x, t, alpha=alpha, gamma=2.0, size_average=True))
    ref = _focal_loss_ref(x, t, alpha, 2.0, True)
    np.testing.assert_allclose(np.asarray(out), np.asarray(ref), rtol=2e-4, atol=1e-6)

    # Case 2: ragged spatial size (HW=100 < one 128-lane tile) and sum reduction ->
    # exercises the in-kernel tail mask (no jnp.pad copies anywhere).
    N2, H2, W2 = 2, 10, 10
    x2 = jax.random.normal(ks[2], (N2, C, H2, W2), dtype=jnp.float32)
    t2 = jax.random.randint(ks[3], (N2, H2, W2), 0, C, dtype=jnp.int32)
    out2 = jax.block_until_ready(focal_loss(x2, t2, alpha=alpha, gamma=2.0, size_average=False))
    ref2 = _focal_loss_ref(x2, t2, alpha, 2.0, False)
    np.testing.assert_allclose(np.asarray(out2), np.asarray(ref2), rtol=1e-4, atol=1e-5)

    # Case 3: multiple lane tiles (tm override) with a ragged last tile; lane-tile axis
    # becomes the parallel axis and the batch axis is the inner accumulation axis.
    N3, H3, W3 = 2, 16, 40      # HW = 640, tm = 256 -> 3 lane tiles, last one half OOB
    x3 = jax.random.normal(ks[4], (N3, C, H3, W3), dtype=jnp.float32)
    t3 = jax.random.randint(ks[5], (N3, H3, W3), 0, C, dtype=jnp.int32)
    out3 = jax.block_until_ready(
        focal_loss(x3, t3, alpha=alpha, gamma=2.0, size_average=True, tm=256))
    ref3 = _focal_loss_ref(x3, t3, alpha, 2.0, True)
    np.testing.assert_allclose(np.asarray(out3), np.asarray(ref3), rtol=1e-4, atol=1e-6)

    print("KERNEL_OK")
</pallas_src>

<mosaic_0001>
module attributes {stable_mosaic.version = 11 : i64} {
  func.func @_focal_kernel(%arg0: i32, %arg1: i32, %arg2: memref<1x5x256xbf16, #tpu.memory_space<vmem>>, %arg3: memref<1x1x256xi8, #tpu.memory_space<vmem>>, %arg4: memref<5x1xf32, #tpu.memory_space<vmem>>, %arg5: memref<1x1x256xf32, #tpu.memory_space<vmem>>) attributes {dimension_semantics = [#tpu.dimension_semantics<parallel>, #tpu.dimension_semantics<arbitrary>], iteration_bounds = array<i64: 2, 1>, scalar_prefetch = 0 : i64, scratch_operands = 0 : i64, tpu.core_type = #tpu.core_type<tc>, window_params = [{transform_indices = @transform_0, window_bounds = array<i64: 1, 5, 256>}, {transform_indices = @transform_1, window_bounds = array<i64: 1, 1, 256>}, {pipeline_mode = #tpu.pipeline_mode<synchronous>, transform_indices = @transform_2, window_bounds = array<i64: 5, 1>}, {transform_indices = @transform_3, window_bounds = array<i64: 1, 1, 256>}]} {
    %c0_i32 = arith.constant 0 : i32
    %0 = arith.cmpi eq, %arg1, %c0_i32 : i32
    %1 = arith.extui %0 : i1 to i32
    %c0_i32_0 = arith.constant 0 : i32
    %2 = arith.cmpi ne, %1, %c0_i32_0 : i32
    scf.if %2 {
      %cst_20 = arith.constant 0.000000e+00 : f32
      %47 = vector.broadcast %cst_20 : f32 to vector<1x256xf32>
      %c0_21 = arith.constant 0 : index
      %c0_22 = arith.constant 0 : index
      %c0_23 = arith.constant 0 : index
      %48 = vector.load %arg5[%c0_21, %c0_22, %c0_23] : memref<1x1x256xf32, #tpu.memory_space<vmem>>, vector<1x1x256xf32>
      %49 = vector.shape_cast %48 : vector<1x1x256xf32> to vector<1x256xf32>
      %50 = vector.shape_cast %47 : vector<1x256xf32> to vector<1x1x256xf32>
      tpu.vector_store %arg5[%c0_21, %c0_22, %c0_23], %50 {strides = array<i32>} : memref<1x1x256xf32, #tpu.memory_space<vmem>>, vector<1x1x256xf32>,
    } else {
    }
    %c0 = arith.constant 0 : index
    %c0_1 = arith.constant 0 : index
    %c0_2 = arith.constant 0 : index
    %3 = vector.load %arg2[%c0, %c0_1, %c0_2] : memref<1x5x256xbf16, #tpu.memory_space<vmem>>, vector<1x5x256xbf16>
    %4 = vector.shape_cast %3 : vector<1x5x256xbf16> to vector<5x256xbf16>
    %5 = arith.extf %4 : vector<5x256xbf16> to vector<5x256xf32>
    %c0_3 = arith.constant 0 : index
    %c0_4 = arith.constant 0 : index
    %c0_5 = arith.constant 0 : index
    %6 = vector.load %arg3[%c0_3, %c0_4, %c0_5] : memref<1x1x256xi8, #tpu.memory_space<vmem>>, vector<1x1x256xi8>
    %7 = vector.shape_cast %6 : vector<1x1x256xi8> to vector<1x256xi8>
    %8 = arith.extsi %7 : vector<1x256xi8> to vector<1x256xi32>
    %c0_6 = arith.constant 0 : index
    %c0_7 = arith.constant 0 : index
    %9 = vector.load %arg4[%c0_6, %c0_7] : memref<5x1xf32, #tpu.memory_space<vmem>>, vector<5x1xf32>
    %cst = arith.constant dense<0xFF800000> : vector<256xf32>
    %10 = vector.multi_reduction <maximumf>, %5, %cst [0] : vector<5x256xf32> to vector<256xf32>
    %11 = vector.shape_cast %10 : vector<256xf32> to vector<1x256xf32>
    %12 = vector.broadcast %11 : vector<1x256xf32> to vector<5x256xf32>
    %13 = arith.subf %5, %12 : vector<5x256xf32>
    %14 = math.exp %13 : vector<5x256xf32>
    %cst_8 = arith.constant dense<0.000000e+00> : vector<256xf32>
    %15 = vector.multi_reduction <add>, %14, %cst_8 [0] : vector<5x256xf32> to vector<256xf32>
    %16 = vector.shape_cast %15 : vector<256xf32> to vector<1x256xf32>
    %17 = math.log %16 : vector<1x256xf32>
    %18 = tpu.iota {dimensions = array<i32: 0>} : vector<5x256xi32>
    %19 = vector.broadcast %8 : vector<1x256xi32> to vector<5x256xi32>
    %20 = arith.cmpi eq, %18, %19 : vector<5x256xi32>
    %21 = arith.extui %20 : vector<5x256xi1> to vector<5x256xi32>
    %22 = arith.sitofp %21 : vector<5x256xi32> to vector<5x256xf32>
    %23 = arith.mulf %13, %22 : vector<5x256xf32>
    %cst_9 = arith.constant dense<0.000000e+00> : vector<256xf32>
    %24 = vector.multi_reduction <add>, %23, %cst_9 [0] : vector<5x256xf32> to vector<256xf32>
    %25 = vector.shape_cast %24 : vector<256xf32> to vector<1x256xf32>
    %26 = vector.broadcast %9 : vector<5x1xf32> to vector<5x256xf32>
    %27 = arith.mulf %26, %22 : vector<5x256xf32>
    %cst_10 = arith.constant dense<0.000000e+00> : vector<256xf32>
    %28 = vector.multi_reduction <add>, %27, %cst_10 [0] : vector<5x256xf32> to vector<256xf32>
    %29 = vector.shape_cast %28 : vector<256xf32> to vector<1x256xf32>
    %30 = arith.subf %25, %17 : vector<1x256xf32>
    %31 = math.exp %30 : vector<1x256xf32>
    %cst_11 = arith.constant 1.000000e+00 : f32
    %32 = vector.broadcast %cst_11 : f32 to vector<1x256xf32>
    %33 = arith.subf %32, %31 : vector<1x256xf32>
    %cst_12 = arith.constant 0.000000e+00 : f32
    %34 = vector.broadcast %cst_12 : f32 to vector<1x256xf32>
    %35 = arith.maximumf %33, %34 : vector<1x256xf32>
    %36 = arith.mulf %35, %35 : vector<1x256xf32>
    %cst_13 = arith.constant 0.000000e+00 : f32
    %37 = vector.broadcast %cst_13 : f32 to vector<1x256xf32>
    %38 = arith.subf %37, %29 : vector<1x256xf32>
    %39 = arith.mulf %38, %36 : vector<1x256xf32>
    %40 = arith.mulf %39, %30 : vector<1x256xf32>
    %c0_14 = arith.constant 0 : index
    %c0_15 = arith.constant 0 : index
    %c0_16 = arith.constant 0 : index
    %41 = vector.load %arg5[%c0_14, %c0_15, %c0_16] : memref<1x1x256xf32, #tpu.memory_space<vmem>>, vector<1x1x256xf32>
    %42 = vector.shape_cast %41 : vector<1x1x256xf32> to vector<1x256xf32>
    %43 = arith.addf %42, %40 : vector<1x256xf32>
    %c0_17 = arith.constant 0 : index
    %c0_18 = arith.constant 0 : index
    %c0_19 = arith.constant 0 : index
    %44 = vector.load %arg5[%c0_17, %c0_18, %c0_19] : memref<1x1x256xf32, #tpu.memory_space<vmem>>, vector<1x1x256xf32>
    %45 = vector.shape_cast %44 : vector<1x1x256xf32> to vector<1x256xf32>
    %46 = vector.shape_cast %43 : vector<1x256xf32> to vector<1x1x256xf32>
    tpu.vector_store %arg5[%c0_17, %c0_18, %c0_19], %46 {strides = array<i32>} : memref<1x1x256xf32, #tpu.memory_space<vmem>>, vector<1x1x256xf32>,
    return
  }
  func.func @transform_0(%arg0: i32, %arg1: i32) -> (i32, i32, i32) {
    %c0_i32 = arith.constant 0 : i32
    %c0_i32_0 = arith.constant 0 : i32
    return %arg0, %c0_i32, %arg1 : i32, i32, i32
  }
  func.func @transform_1(%arg0: i32, %arg1: i32) -> (i32, i32, i32) {
    %c0_i32 = arith.constant 0 : i32
    %c0_i32_0 = arith.constant 0 : i32
    return %arg0, %c0_i32, %arg1 : i32, i32, i32
  }
  func.func @transform_2(%arg0: i32, %arg1: i32) -> (i32, i32) {
    %c0_i32 = arith.constant 0 : i32
    %c0_i32_0 = arith.constant 0 : i32
    %c0_i32_1 = arith.constant 0 : i32
    return %c0_i32, %c0_i32_0 : i32, i32
  }
  func.func @transform_3(%arg0: i32, %arg1: i32) -> (i32, i32, i32) {
    %c0_i32 = arith.constant 0 : i32
    %c0_i32_0 = arith.constant 0 : i32
    %c0_i32_1 = arith.constant 0 : i32
    return %arg0, %c0_i32, %c0_i32_0 : i32, i32, i32
  }
}

</mosaic_0001>

<llo_original>
// kernel: tpu_custom_call.1
$region0: #{tpu_custom_call.1}
  #allocation0 [shape = 'u32[]', space=smem, size = 0x4, offset = 0x4, fixed_abs, tag = 'smem constant byte address 0x4 - core index']
  #allocation1 [shape = 'u32[144,128]{1,0:T(1,128)}', space=vmem, size = 0x12000, scoped, tag = 'internal scratch']
  %s0 = inlined_call_operand.vmem [shape: bf16[2,5,256], index: 0, kind: input, shape index: {}]
  %s1 = inlined_call_operand.vmem [shape: s8[2,1,256], index: 1, kind: input, shape index: {}]
  %s2 = inlined_call_operand.vmem [shape: f32[5,1], index: 2, kind: input, shape index: {}]
  %s3 = inlined_call_operand.hbm [shape: f32[2,1,256], index: 3, kind: output, shape index: {}]
  %s4 = sld [smem:[#allocation0]]
  $region49: #{tpu_custom_call.1} parent=0
    _
  %s6 = ssub.s32 1, %s4
  %s7 = scalar_select 0, %s6, %s4
  $region1: #{tpu_custom_call.1} parent=0
    #allocation2 [shape = 'u8[2048]{0}', space=vmem, size = 0x800, scoped, tag = 'output window, operand 0']
    #allocation3 [shape = 's32[2]{0}', space=sflag, size = 0x8, scoped, tag = 'scoped memory for tpu_custom_call.1']
    %8 = vsyncpa [#allocation3], 0
    %s9 = scalar_lea.sflag [#allocation3], 1
    %10 = vsyncpa %s9, 0
    loop: start=0, step=1, limit=4
    $region2: #{tpu_custom_call.1} parent=1 // loop_pre_header
      _
    $region3: #{tpu_custom_call.1} parent=1 // loop_header
      %s12 = sphi 0, %s16
      %p13 = scmp.ge.s32.totalorder %s12, 4
      %s19 = sphi 0, %s31
      %s20 = sphi 0, %s27
      %s21 = sphi 0, %s19
      %s22 = sphi 0, %s20
      %s23 = sphi 0, %s21
      %s24 = sphi 0, %s22
      %s36 = sphi 0, %s38
      %s39 = sphi 0, %s36
      %s40 = sphi 0, %s39
      %s56 = sphi 0, %s40
      %s64 = sphi 0, %s66
      %s67 = sphi 0, %s64
      %s68 = sphi 0, %s67
      %s84 = sphi 0, %s68
      %s88 = sphi 0, %s88
      %s90 = sphi 0, %s88
      %s91 = sphi 0, %s90
      %s105 = sphi 0, %s91
      %s111 = sphi 0, %s113
      %s114 = sphi 0, %s111
      %s115 = sphi 0, %s114
      %s131 = sphi 0, %s115
    $region4: #{tpu_custom_call.1} parent=1 // loop_header_branch
      %15 = sbr.rel (%p13) target = $region8
    $region5: #{tpu_custom_call.1} parent=1 // loop_body
      %s17 = ssub.s32 %s12, 1
      %s18 = ssub.s32 %s12, 2
      %s25 = sadd.s32 1, %s20
      %p26 = scmp.ge.s32.totalorder %s25, 1
      %s27 = scalar_select %p26, 0, %s25
      %s28 = sadd.s32 1, %s19
      %s29 = scalar_select %p26, %s28, %s19
      %p30 = scmp.ge.s32.totalorder %s29, 2
      %s31 = scalar_select %p30, 0, %s29
      %s32 = ssub.s32 %s19, %s31
      %s33 = ssub.s32 %s20, %s27
      %s34 = sor.u32 %s32, %s33
      %p35 = scmp.eq.s32.totalorder %s34, 0
      %s37 = sadd.s32 %s36, 1
      %s38 = scalar_select %p35, %s36, %s37
      %p41 = pneg %p35
      %p42 = scmp.eq.s32.totalorder %s12, 1
      %p43 = por %p41, %p42
      %p44 = scmp.ne.s32.totalorder %s36, %s39
      %p45 = scmp.eq.s32.totalorder %s12, 0
      %p46 = por %p44, %p45
      %p47 = scmp.ne.s32.totalorder %s36, %s39
      %p48 = scmp.eq.s32.totalorder %s17, 1
      %p49 = por %p47, %p48
      %p50 = scmp.ne.s32.totalorder %s39, %s40
      %p51 = scmp.eq.s32.totalorder %s17, 0
      %p52 = por %p50, %p51
      %p53 = scmp.ne.s32.totalorder %s39, %s40
      %p54 = scmp.eq.s32.totalorder %s18, 1
      %p55 = por %p53, %p54
      %p57 = scmp.ne.s32.totalorder %s40, %s56
      %p58 = scmp.eq.s32.totalorder %s18, 0
      %p59 = por %p57, %p58
      %s60 = ssub.s32 %s19, %s31
      %s61 = ssub.s32 %s20, %s27
      %s62 = sor.u32 %s60, %s61
      %p63 = scmp.eq.s32.totalorder %s62, 0
      %s65 = sadd.s32 %s64, 1
      %s66 = scalar_select %p63, %s64, %s65
      %p69 = pneg %p63
      %p70 = scmp.eq.s32.totalorder %s12, 1
      %p71 = por %p69, %p70
      %p72 = scmp.ne.s32.totalorder %s64, %s67
      %p73 = scmp.eq.s32.totalorder %s12, 0
      %p74 = por %p72, %p73
      %p75 = scmp.ne.s32.totalorder %s64, %s67
      %p76 = scmp.eq.s32.totalorder %s17, 1
      %p77 = por %p75, %p76
      %p78 = scmp.ne.s32.totalorder %s67, %s68
      %p79 = scmp.eq.s32.totalorder %s17, 0
      %p80 = por %p78, %p79
      %p81 = scmp.ne.s32.totalorder %s67, %s68
      %p82 = scmp.eq.s32.totalorder %s18, 1
      %p83 = por %p81, %p82
      %p85 = scmp.ne.s32.totalorder %s68, %s84
      %p86 = scmp.eq.s32.totalorder %s18, 0
      %p87 = por %p85, %p86
      %s89 = sadd.s32 %s88, 1
      %p92 = scmp.eq.s32.totalorder %s12, 1
      %p93 = scmp.ne.s32.totalorder %s88, %s90
      %p94 = scmp.eq.s32.totalorder %s12, 0
      %p95 = por %p93, %p94
      %p96 = scmp.ne.s32.totalorder %s88, %s90
      %p97 = scmp.eq.s32.totalorder %s17, 1
      %p98 = por %p96, %p97
      %p99 = scmp.ne.s32.totalorder %s90, %s91
      %p100 = scmp.eq.s32.totalorder %s17, 0
      %p101 = por %p99, %p100
      %p102 = scmp.ne.s32.totalorder %s90, %s91
      %p103 = scmp.eq.s32.totalorder %s18, 1
      %p104 = por %p102, %p103
      %p106 = scmp.ne.s32.totalorder %s91, %s105
      %p107 = scmp.eq.s32.totalorder %s18, 0
      %p108 = por %p106, %p107
      %s109 = ssub.s32 %s19, %s31
      %p110 = scmp.eq.s32.totalorder %s109, 0
      %s112 = sadd.s32 %s111, 1
      %s113 = scalar_select %p110, %s111, %s112
      %p116 = pneg %p110
      %p117 = scmp.eq.s32.totalorder %s12, 1
      %p118 = por %p116, %p117
      %p119 = scmp.ne.s32.totalorder %s111, %s114
      %p120 = scmp.eq.s32.totalorder %s12, 0
      %p121 = por %p119, %p120
      %p122 = scmp.ne.s32.totalorder %s111, %s114
      %p123 = scmp.eq.s32.totalorder %s17, 1
      %p124 = por %p122, %p123
      %p125 = scmp.ne.s32.totalorder %s114, %s115
      %p126 = scmp.eq.s32.totalorder %s17, 0
      %p127 = por %p125, %p126
      %p128 = scmp.ne.s32.totalorder %s114, %s115
      %p129 = scmp.eq.s32.totalorder %s18, 1
      %p130 = por %p128, %p129
      %p132 = scmp.ne.s32.totalorder %s115, %s131
      %p133 = scmp.eq.s32.totalorder %s18, 0
      %p134 = por %p132, %p133
      %p135 = scmp.le.s32.totalorder 1, %s12
      %p136 = scmp.lt.s32.totalorder %s12, 3
      %p137 = pnand %p135, %p136
      %p138 = pneg %p137
      // Predicated region
      $region9: #{tpu_custom_call.1} parent=5 // pred_check
        _
      $region10: #{tpu_custom_call.1} parent=5 // pred_check_branch
        %140 = sbr.rel (%p137) target = $region12
      $region11: #{tpu_custom_call.1} parent=5 // pred_region
        %s141 = ssub.s32 %s12, 1
        // Predicated region
        $region13: #{tpu_custom_call.1} parent=11 // pred_check
          %p142 = pneg %p101
        $region14: #{tpu_custom_call.1} parent=11 // pred_check_branch
          %144 = sbr.rel (%p142) target = $region16
        $region15: #{tpu_custom_call.1} parent=11 // pred_region
          _
        $region16: #{tpu_custom_call.1} parent=11 // pred_fallthru
          _
      $region12: #{tpu_custom_call.1} parent=5 // pred_fallthru
        _
      %p145 = scmp.lt.s32.totalorder %s12, 2
      // Predicated region
      $region17: #{tpu_custom_call.1} parent=5 // pred_check
        %p146 = pneg %p145
      $region18: #{tpu_custom_call.1} parent=5 // pred_check_branch
        %148 = sbr.rel (%p146) target = $region20
      $region19: #{tpu_custom_call.1} parent=5 // pred_region
        // Predicated region
        $region21: #{tpu_custom_call.1} parent=19 // pred_check
          %p149 = pneg %p46
        $region22: #{tpu_custom_call.1} parent=19 // pred_check_branch
          %151 = sbr.rel (%p149) target = $region24
        $region23: #{tpu_custom_call.1} parent=19 // pred_region
          %s152 = smul.u32 2, %s20
          %p153 = scmp.lt.s32.totalorder %s19, 1
          %s154 = scalar_select %p153, %s19, 1
          %p155 = scmp.lt.s32.totalorder %s152, 1
          %s156 = scalar_select %p155, %s152, 1
          %s157 = smul.addr %s154, 2
          %s158 = sadd.s32 %s156, %s157
          %s159 = smul.addr %s158, 4
          %s160 = scalar_lea.vmem %s0, %s159
          %s161 = smul.u32 2, %s20
        $region24: #{tpu_custom_call.1} parent=19 // pred_fallthru
          _
        // Predicated region
        $region25: #{tpu_custom_call.1} parent=19 // pred_check
          %p162 = pneg %p74
        $region26: #{tpu_custom_call.1} parent=19 // pred_check_branch
          %164 = sbr.rel (%p162) target = $region28
        $region27: #{tpu_custom_call.1} parent=19 // pred_region
          %s165 = smul.u32 2, %s20
          %p166 = scmp.lt.s32.totalorder %s19, 1
          %s167 = scalar_select %p166, %s19, 1
          %p168 = scmp.lt.s32.totalorder %s165, 1
          %s169 = scalar_select %p168, %s165, 1
          %s170 = smul.addr %s167, 2
          %s171 = sadd.s32 %s169, %s170
          %s172 = scalar_lea.vmem %s1, %s171
          %s173 = smul.u32 2, %s20
        $region28: #{tpu_custom_call.1} parent=19 // pred_fallthru
          _
      $region20: #{tpu_custom_call.1} parent=5 // pred_fallthru
        _
      %p174 = scmp.le.s32.totalorder 1, %s12
      %p175 = scmp.lt.s32.totalorder %s12, 3
      %p176 = pnand %p174, %p175
      %p177 = pneg %p176
      // Predicated region
      $region29: #{tpu_custom_call.1} parent=5 // pred_check
        _
      $region30: #{tpu_custom_call.1} parent=5 // pred_check_branch
        %179 = sbr.rel (%p176) target = $region32
      $region31: #{tpu_custom_call.1} parent=5 // pred_region
        %s180 = ssub.s32 %s12, 1
        %s181 = smul.u32 2, %s22
        %p182 = scmp.lt.s32.totalorder %s21, 1
        %s183 = scalar_select %p182, %s21, 1
        %p184 = scmp.lt.s32.totalorder %s181, 1
        %s185 = scalar_select %p184, %s181, 1
        %s186 = smul.addr %s183, 2
        %s187 = sadd.s32 %s185, %s186
        %s188 = smul.addr %s187, 4
        %s189 = scalar_lea.vmem %s0, %s188
        %p190 = pneg %p52
        %p191 = pneg %p49
        %s192 = smul.u32 2, %s22
        %p193 = scmp.lt.s32.totalorder %s21, 1
        %s194 = scalar_select %p193, %s21, 1
        %p195 = scmp.lt.s32.totalorder %s192, 1
        %s196 = scalar_select %p195, %s192, 1
        %s197 = smul.addr %s194, 2
        %s198 = sadd.s32 %s196, %s197
        %s199 = scalar_lea.vmem %s1, %s198
        %p200 = pneg %p80
        %p201 = pneg %p77
        %p202 = pneg %p101
        %p203 = pneg %p98
        %p204 = pneg %p127
        %p205 = pneg %p124
        %s206 = sand.u32 %s114, 1
        %s207 = scalar_lea.sflag [#allocation3], %s206
        %s208 = sand.u32 %s114, 1
        %s209 = smul.addr %s208, 2
        %s210 = scalar_lea.vmem [#allocation2], %s209
        %s211 = smul.u32 2, %s22
        %p212 = scmp.lt.s32.totalorder %s21, 1
        %s213 = scalar_select %p212, %s21, 1
        %p214 = scmp.lt.s32.totalorder %s211, 1
        %s215 = scalar_select %p214, %s211, 1
        %s216 = smul.addr %s213, 2
        %s217 = sadd.s32 %s215, %s216
        %s218 = smul.addr %s217, 4
        %s219 = scalar_lea.vmem %s0, %s218
        %s220 = smul.u32 2, %s22
        %s221 = smul.u32 2, %s22
        %p222 = scmp.lt.s32.totalorder %s21, 1
        %s223 = scalar_select %p222, %s21, 1
        %p224 = scmp.lt.s32.totalorder %s221, 1
        %s225 = scalar_select %p224, %s221, 1
        %s226 = smul.addr %s223, 2
        %s227 = sadd.s32 %s225, %s226
        %s228 = scalar_lea.vmem %s1, %s227
        %s229 = smul.u32 2, %s22
        %p230 = scmp.eq.s32.totalorder %s22, 0
        // Predicated region
        $region33: #{tpu_custom_call.1} parent=31 // pred_check
          %p231 = pneg %p230
        $region34: #{tpu_custom_call.1} parent=31 // pred_check_branch
          %233 = sbr.rel (%p231) target = $region36
        $region35: #{tpu_custom_call.1} parent=31 // pred_region
          %v234 = vlaneseq
          %vm235 = vcmp.ge.s32.totalorder %v234, 0
          %vm236 = vcmp.lt.s32.totalorder %v234, 256
          %vm237 = vmand %vm235, %vm236
          %238 = vst.msk [vmem:[%s210] sm:$0x3] %vm237, 0.0
        $region36: #{tpu_custom_call.1} parent=31 // pred_fallthru
          _
        %v239 = vld [vmem:[%s219] sm:$0x77]
        %v240 = vunpack.c.l.bf16 %v239
        %v241 = vunpack.c.h.bf16 %v239
        %v242 = vld [vmem:[%s228] sm:$0x3]
        %v243 = vunpack.c.0.s8 %v242
        %v244 = vld [vmem:[%s2] sm:$0x1f]
        %vm245 = vcmask 1044480
        %v246 = vsel %vm245, %v240, -inf
        %v247 = vrot.slane %v246, 4
        %v248 = vmax.f32 %v246, %v247
        %v249 = vrot.slane %v248, 2
        %v250 = vmax.f32 %v248, %v249
        %v251 = vrot.slane %v250, 1
        %v252 = vmax.f32 %v250, %v251
        %v253 = vsel %vm245, %v241, -inf
        %v254 = vrot.slane %v253, 4
        %v255 = vmax.f32 %v253, %v254
        %v256 = vrot.slane %v255, 2
        %v257 = vmax.f32 %v255, %v256
        %v258 = vrot.slane %v257, 1
        %v259 = vmax.f32 %v257, %v258
        %v260 = vsub.f32 %v240, %v252
        %v261 = vsub.f32 %v241, %v259
        %v262 = vmul.f32 %v260, 1.442695
        %v263 = vpow.pop %v262
        %v264 = vmul.f32 %v261, 1.442695
        %v265 = vpow.pop %v264
        %v266 = vsel %vm245, %v263, 0.0
        %v267 = vrot.slane %v266, 4
        %v268 = vadd.f32 %v266, %v267
        %v269 = vrot.slane %v268, 2
        %v270 = vadd.f32 %v268, %v269
        %v271 = vrot.slane %v270, 1
        %v272 = vadd.f32 %v270, %v271
        %v273 = vsel %vm245, %v265, 0.0
        %v274 = vrot.slane %v273, 4
        %v275 = vadd.f32 %v273, %v274
        %v276 = vrot.slane %v275, 2
        %v277 = vadd.f32 %v275, %v276
        %v278 = vrot.slane %v277, 1
        %v279 = vadd.f32 %v277, %v278
        %v280 = vlog2.pop %v272
        %v281 = vmul.f32 %v280, 0.6931472
        %v282 = vlog2.pop %v279
        %v283 = vmul.f32 %v282, 0.6931472
        %v284 = vlaneseq
        %v285 = vshrl.u32 %v284, 7
        %v286 = vlaneseq
        %v287 = vshrl.u32 %v286, 7
        %v288 = vsub.s32 0, %v287
        %v289 = vrot.slane %v243, %v288
        %v290 = vlaneseq
        %v291 = vshrl.u32 %v290, 7
        %v292 = vsub.s32 4, %v291
        %v293 = vrot.slane %v243, %v292
        %v294 = vlaneseq
        %v295 = vshrl.u32 %v294, 7
        %v296 = vsub.s32 0, %v295
        %v297 = vrot.slane %v289, %v296
        %v298 = vlaneseq
        %v299 = vshrl.u32 %v298, 7
        %v300 = vsub.s32 0, %v299
        %v301 = vrot.slane %v293, %v300
        %vm302 = vcmp.eq.s32.totalorder %v285, %v297
        %vm303 = vcmp.eq.s32.totalorder %v285, %v301
        %v304 = vsel %vm302, 1, 0
        %v305 = vsel %vm303, 1, 0
        %v306 = vcvt.s32.f32 %v304
        %v307 = vcvt.s32.f32 %v305
        %v308 = vmul.f32 %v260, %v306
        %v309 = vmul.f32 %v261, %v307
        %v310 = vsel %vm245, %v308, 0.0
        %v311 = vrot.slane %v310, 4
        %v312 = vadd.f32 %v310, %v311
        %v313 = vrot.slane %v312, 2
        %v314 = vadd.f32 %v312, %v313
        %v315 = vrot.slane %v314, 1
        %v316 = vadd.f32 %v314, %v315
        %v317 = vsel %vm245, %v309, 0.0
        %v318 = vrot.slane %v317, 4
        %v319 = vadd.f32 %v317, %v318
        %v320 = vrot.slane %v319, 2
        %v321 = vadd.f32 %v319, %v320
        %v322 = vrot.slane %v321, 1
        %v323 = vadd.f32 %v321, %v322
        %325 = vset.pattern.permute.xlu0 0
        %326 = vperm.xlu0 %325, %v244
        %v327 = vpop.permute.xlu0 %326
        %v329 = vmul.f32 %v327, %v306
        %v330 = vmul.f32 %v327, %v307
        %v331 = vsel %vm245, %v329, 0.0
        %v332 = vrot.slane %v331, 4
        %v333 = vadd.f32 %v331, %v332
        %v334 = vrot.slane %v333, 2
        %v335 = vadd.f32 %v333, %v334
        %v336 = vrot.slane %v335, 1
        %v337 = vadd.f32 %v335, %v336
        %v338 = vsel %vm245, %v330, 0.0
        %v339 = vrot.slane %v338, 4
        %v340 = vadd.f32 %v338, %v339
        %v341 = vrot.slane %v340, 2
        %v342 = vadd.f32 %v340, %v341
        %v343 = vrot.slane %v342, 1
        %v344 = vadd.f32 %v342, %v343
        %v345 = vsub.f32 %v316, %v281
        %v346 = vsub.f32 %v323, %v283
        %v347 = vmul.f32 %v345, 1.442695
        %v348 = vpow.pop %v347
        %v349 = vmul.f32 %v346, 1.442695
        %v350 = vpow.pop %v349
        %v351 = vsub.f32 1.0, %v348
        %v352 = vsub.f32 1.0, %v350
        %v353 = vmax.f32 %v351, 0.0
        %v354 = vmax.f32 %v352, 0.0
        %v355 = vmul.f32 %v353, %v353
        %v356 = vmul.f32 %v354, %v354
        %v357 = vsub.f32 0.0, %v337
        %v358 = vsub.f32 0.0, %v344
        %v359 = vmul.f32 %v357, %v355
        %v360 = vmul.f32 %v358, %v356
        %v361 = vmul.f32 %v359, %v345
        %v362 = vmul.f32 %v360, %v346
        %v363 = vld [vmem:[%s210] sm:$0x3]
        %v366 = vcombine.low %v361, %v362
        %v368 = vunpack.c.l.s4 1966171168
        %v369 = vunpack.c.0.s8 %v368
        %v370 = vlaneseq
        %v371 = vshrl.u32 %v370, 7
        %v372 = vsub.s32 %v369, %v371
        %v373 = vrot.slane %v366, %v372
        %v375 = vunpack.c.l.s4 1966171168
        %v376 = vunpack.c.0.s8 %v375
        %v377 = vlaneseq
        %v378 = vshrl.u32 %v377, 7
        %v379 = vsub.s32 %v376, %v378
        %v380 = vrot.slane %v373, %v379
        %v382 = vadd.f32 %v363, %v380
        %v383 = vlaneseq
        %vm384 = vcmp.ge.s32.totalorder %v383, 0
        %vm385 = vcmp.lt.s32.totalorder %v383, 256
        %vm386 = vmand %vm384, %vm385
        %387 = vst.msk [vmem:[%s210] sm:$0x3] %vm386, %v382
        %s388 = sand.u32 %s114, 1
        %s389 = scalar_lea.sflag [#allocation3], %s388
        %s390 = sand.u32 %s114, 1
        %s391 = smul.addr %s390, 2
        %s392 = scalar_lea.vmem [#allocation2], %s391
        // Predicated region
        $region37: #{tpu_custom_call.1} parent=31 // pred_check
          %p393 = pneg %p124
        $region38: #{tpu_custom_call.1} parent=31 // pred_check_branch
          %395 = sbr.rel (%p393) target = $region40
        $region39: #{tpu_custom_call.1} parent=31 // pred_region
          %s397 = ssub.s32 32, 32
          %398 = vsyncadd %s389, %s397
          %s399 = smul.addr %s21, 2
          %s400 = smul.addr %s399, 16
          %s401 = scalar_lea.hbm %s3, %s400
          %s403 = sshll.u32 %s392, 4
          %s404 = int_to_ptr.vmem [resolvable:$true] %s403
          %406 = dma.vmem_to_hbm [thread:$0]  %s404, 32, %s401, %s389
        $region40: #{tpu_custom_call.1} parent=31 // pred_fallthru
          _
      $region32: #{tpu_custom_call.1} parent=5 // pred_fallthru
        _
      %p407 = scmp.le.s32.totalorder 2, %s12
      // Predicated region
      $region41: #{tpu_custom_call.1} parent=5 // pred_check
        %p408 = pneg %p407
      $region42: #{tpu_custom_call.1} parent=5 // pred_check_branch
        %410 = sbr.rel (%p408) target = $region44
      $region43: #{tpu_custom_call.1} parent=5 // pred_region
        %s411 = ssub.s32 %s12, 2
        // Predicated region
        $region45: #{tpu_custom_call.1} parent=43 // pred_check
          %p412 = pneg %p130
        $region46: #{tpu_custom_call.1} parent=43 // pred_check_branch
          %414 = sbr.rel (%p412) target = $region48
        $region47: #{tpu_custom_call.1} parent=43 // pred_region
          %s415 = sand.u32 %s115, 1
          %s416 = scalar_lea.sflag [#allocation3], %s415
          %s417 = sand.u32 %s115, 1
          %s418 = smul.addr %s417, 2
          %s419 = scalar_lea.vmem [#allocation2], %s418
          %420 = dma.done %s416, 32
        $region48: #{tpu_custom_call.1} parent=43 // pred_fallthru
          _
      $region44: #{tpu_custom_call.1} parent=5 // pred_fallthru
        _
    $region6: #{tpu_custom_call.1} parent=1 // loop_footer
      %s16 = sadd.s32 1, %s12
    $region7: #{tpu_custom_call.1} parent=1 // loop_footer_branch
      %11 = sbr.rel target = $region3
    $region8: #{tpu_custom_call.1} parent=1 // loop_exit
      _
    %421 = vsyncpa [#allocation3], 1
    %s422 = scalar_lea.sflag [#allocation3], 1
    %423 = vsyncpa %s422, 1

</llo_original>
